<compile_context>
chip_gen: v7x
topology: tpu7x:2x2x1
jax: 0.10.0
libtpu: 0.0.40
codegen_flags: <defaults>
</compile_context>

<pallas_src>
import functools

import jax
import jax.numpy as jnp
import numpy as np
from jax.experimental import pallas as pl
from jax.experimental.pallas import tpu as pltpu


def _round_up(x, m):
    return (x + m - 1) // m * m


def _conv2d_im2col_kernel(x_ref, w_ref, b_ref, o_ref, *, cin, kh, kw, w_in, l_out):
    """One grid step = one block of `bb` images.

    x_ref: (bb, cin, l_pad)        row-major flattened (H*W) input, zero padded.
    w_ref: (cout_pad, kh*kw*cin)   weights in tap-major (i, j, ci) order, rows
                                   padded with zeros up to a multiple of 8.
    b_ref: (cout_pad, 1)           f32 bias (padded rows are zero).
    o_ref: (bb, cout_pad, l_out)   lane-dense output slab; column p = y*W + x.
    """
    bb = x_ref.shape[0]

    w2d = w_ref[...]                       # fed to the MXU in its native dtype
    bias = b_ref[...]                      # (cout_pad, 1) f32

    # im2col grouped by tap (i, j): one lane-shifted slice per tap covers all
    # cin sublanes -> kh*kw slices + one sublane concat per image.
    slabs = []
    for n_img in range(bb):
        xn = x_ref[n_img]                  # (cin, l_pad)
        pieces = []
        for i in range(kh):
            for j in range(kw):
                s = i * w_in + j
                pieces.append(xn[:, s:s + l_out])           # (cin, l_out)
        slabs.append(jnp.concatenate(pieces, axis=0))       # (kh*kw*cin, l_out)
    # Batch the matmul: one (K, bb*l_out) patch tile, one MXU dot per grid step.
    patches = slabs[0] if bb == 1 else jnp.concatenate(slabs, axis=1)

    acc = jnp.dot(w2d, patches, preferred_element_type=jnp.float32)  # (cout_pad, bb*l_out)
    out = (acc + bias).astype(o_ref.dtype)                  # single bias broadcast

    # Per-image stores: offsets are multiples of l_out (>=128), so these are
    # lane-aligned full (8, 128)-tile unmasked stores.
    for n_img in range(bb):
        o_ref[n_img] = out[:, n_img * l_out:(n_img + 1) * l_out]


def conv2d_pallas(x, weight, bias, *, batch_block=None):
    """Conv2d, stride=1, padding=0 (VALID), NCHW/OIHW — matches torch.nn.Conv2d.

    x: (N, Cin, H, W), weight: (Cout, Cin, KH, KW), bias: (Cout,).
    Returns (N, Cout, H-KH+1, W-KW+1) in NCHW.
    """
    n, cin, h, w = x.shape
    cout, cin_w, kh, kw = weight.shape
    assert cin_w == cin
    ho, wo = h - kh + 1, w - kw + 1

    # Flatten spatial dims so every im2col tap is a contiguous lane slice; pad
    # the flat axis so every tap slice of length l_out stays in bounds.
    l_keep = ho * w                              # columns holding real pixels (p = y*W + x)
    l_out = _round_up(l_keep, 128)               # lane-dense kernel output width
    l_pad = _round_up((kh - 1) * w + (kw - 1) + l_out, 128)
    x_flat = jnp.pad(x.reshape(n, cin, h * w),
                     ((0, 0), (0, 0), (0, l_pad - h * w)))

    k_dim = kh * kw * cin
    cout_pad = _round_up(cout, 8)                # full unmasked (8,128) output tiles
    # Tap-major (i, j, ci) weight order matches the kernel's concat order; keep
    # the MXU operands in the input dtype (bf16 stays bf16).
    w2d = weight.transpose(0, 2, 3, 1).reshape(cout, k_dim).astype(x.dtype)
    w2d = jnp.pad(w2d, ((0, cout_pad - cout), (0, 0)))
    b2d = jnp.pad(bias.astype(jnp.float32).reshape(cout, 1),
                  ((0, cout_pad - cout), (0, 0)))

    # Batch blocking: whole batch per grid step by default (v5e/v6e, single TC);
    # split in two on v7x so both TensorCores get work; cap against VMEM.
    if batch_block is None:
        bb = n
        try:
            kind = jax.devices()[0].device_kind.lower()
        except Exception:  # pragma: no cover - defensive
            kind = ""
        if n > 1 and "v7" in kind:
            bb = -(-n // 2)
        itemsize = jnp.dtype(x.dtype).itemsize
        per_img = ((cin * l_pad + cout_pad * l_out) * itemsize * 2   # double-buffered I/O
                   + k_dim * l_out * itemsize)                       # patch temporary
        bb = max(1, min(bb, (8 << 20) // max(per_img, 1)))           # ~8 MiB budget
    else:
        bb = batch_block
    bb = min(bb, n)
    n_blocks = -(-n // bb)
    n_pad = n_blocks * bb
    if n_pad != n:
        x_flat = jnp.pad(x_flat, ((0, n_pad - n), (0, 0), (0, 0)))

    kernel = functools.partial(_conv2d_im2col_kernel, cin=cin, kh=kh, kw=kw,
                               w_in=w, l_out=l_out)
    out_flat = pl.pallas_call(
        kernel,
        out_shape=jax.ShapeDtypeStruct((n_pad, cout_pad, l_out), x.dtype),
        grid_spec=pltpu.PrefetchScalarGridSpec(
            num_scalar_prefetch=0,
            grid=(n_blocks,),
            in_specs=[
                pl.BlockSpec((bb, cin, l_pad), lambda b: (b, 0, 0)),
                pl.BlockSpec((cout_pad, k_dim), lambda b: (0, 0)),
                pl.BlockSpec((cout_pad, 1), lambda b: (0, 0)),
            ],
            out_specs=pl.BlockSpec((bb, cout_pad, l_out), lambda b: (b, 0, 0)),
        ),
        compiler_params=pltpu.CompilerParams(
            dimension_semantics=("parallel",)),
    )(x_flat, w2d, b2d)

    # Undo the flat layout in the wrapper (free): column p = y*W + x; keep x < Wo,
    # drop the padded output channels and padded batch entries.
    return out_flat[:n, :cout, :l_keep].reshape(n, cout, ho, w)[:, :, :, :wo]


if __name__ == "__main__":
    key = jax.random.PRNGKey(0)
    kx, kw_, kb = jax.random.split(key, 3)

    N, CIN, H, W = 2, 3, 16, 16
    COUT, KH, KW = 6, 3, 3

    x = jax.random.normal(kx, (N, CIN, H, W), dtype=jnp.float32)

    # Deterministic parameter init mimicking torch.nn.Conv2d default
    # (uniform in [-1/sqrt(fan_in), 1/sqrt(fan_in)], fan_in = CIN*KH*KW).
    bound = 1.0 / np.sqrt(CIN * KH * KW)
    weight = jax.random.uniform(kw_, (COUT, CIN, KH, KW),
                                minval=-bound, maxval=bound, dtype=jnp.float32)
    bias = jax.random.uniform(kb, (COUT,),
                              minval=-bound, maxval=bound, dtype=jnp.float32)

    out = jax.jit(conv2d_pallas)(x, weight, bias)
    out = jax.block_until_ready(out)

    # Reference check against XLA's conv (same semantics as torch Conv2d, VALID).
    ref = jax.lax.conv_general_dilated(
        x, weight, window_strides=(1, 1), padding="VALID",
        dimension_numbers=("NCHW", "OIHW", "NCHW"),
        precision=jax.lax.Precision.HIGHEST) + bias[None, :, None, None]
    np.testing.assert_allclose(np.asarray(out), np.asarray(ref),
                               rtol=1e-4, atol=1e-4)
    assert out.shape == (N, COUT, H - KH + 1, W - KW + 1)

    print("KERNEL_OK")
</pallas_src>

<mosaic_0001>
module attributes {stable_mosaic.version = 11 : i64} {
  func.func @_conv2d_im2col_kernel(%arg0: i32, %arg1: memref<2x3x384xf32, #tpu.memory_space<vmem>>, %arg2: memref<8x27xf32, #tpu.memory_space<vmem>>, %arg3: memref<8x1xf32, #tpu.memory_space<vmem>>, %arg4: memref<2x8x256xf32, #tpu.memory_space<vmem>>) attributes {dimension_semantics = [#tpu.dimension_semantics<parallel>], iteration_bounds = array<i64: 1>, scalar_prefetch = 0 : i64, scratch_operands = 0 : i64, tpu.core_type = #tpu.core_type<tc>, window_params = [{transform_indices = @transform_0, window_bounds = array<i64: 2, 3, 384>}, {pipeline_mode = #tpu.pipeline_mode<synchronous>, transform_indices = @transform_1, window_bounds = array<i64: 8, 27>}, {pipeline_mode = #tpu.pipeline_mode<synchronous>, transform_indices = @transform_2, window_bounds = array<i64: 8, 1>}, {transform_indices = @transform_3, window_bounds = array<i64: 2, 8, 256>}]} {
    %c0 = arith.constant 0 : index
    %c0_0 = arith.constant 0 : index
    %0 = vector.load %arg2[%c0, %c0_0] : memref<8x27xf32, #tpu.memory_space<vmem>>, vector<8x27xf32>
    %c0_1 = arith.constant 0 : index
    %c0_2 = arith.constant 0 : index
    %1 = vector.load %arg3[%c0_1, %c0_2] : memref<8x1xf32, #tpu.memory_space<vmem>>, vector<8x1xf32>
    %c0_3 = arith.constant 0 : index
    %c0_4 = arith.constant 0 : index
    %c0_5 = arith.constant 0 : index
    %2 = vector.load %arg1[%c0_3, %c0_4, %c0_5] : memref<2x3x384xf32, #tpu.memory_space<vmem>>, vector<1x3x384xf32>
    %3 = vector.shape_cast %2 : vector<1x3x384xf32> to vector<3x384xf32>
    %4 = vector.extract_strided_slice %3 {offsets = [0, 0], sizes = [3, 256], strides = [1, 1]} : vector<3x384xf32> to vector<3x256xf32>
    %5 = vector.extract_strided_slice %3 {offsets = [0, 1], sizes = [3, 256], strides = [1, 1]} : vector<3x384xf32> to vector<3x256xf32>
    %6 = vector.extract_strided_slice %3 {offsets = [0, 2], sizes = [3, 256], strides = [1, 1]} : vector<3x384xf32> to vector<3x256xf32>
    %7 = vector.extract_strided_slice %3 {offsets = [0, 16], sizes = [3, 256], strides = [1, 1]} : vector<3x384xf32> to vector<3x256xf32>
    %8 = vector.extract_strided_slice %3 {offsets = [0, 17], sizes = [3, 256], strides = [1, 1]} : vector<3x384xf32> to vector<3x256xf32>
    %9 = vector.extract_strided_slice %3 {offsets = [0, 18], sizes = [3, 256], strides = [1, 1]} : vector<3x384xf32> to vector<3x256xf32>
    %10 = vector.extract_strided_slice %3 {offsets = [0, 32], sizes = [3, 256], strides = [1, 1]} : vector<3x384xf32> to vector<3x256xf32>
    %11 = vector.extract_strided_slice %3 {offsets = [0, 33], sizes = [3, 256], strides = [1, 1]} : vector<3x384xf32> to vector<3x256xf32>
    %12 = vector.extract_strided_slice %3 {offsets = [0, 34], sizes = [3, 256], strides = [1, 1]} : vector<3x384xf32> to vector<3x256xf32>
    %13 = tpu.concatenate %4, %5, %6, %7, %8, %9, %10, %11, %12 in 0 : vector<3x256xf32>, vector<3x256xf32>, vector<3x256xf32>, vector<3x256xf32>, vector<3x256xf32>, vector<3x256xf32>, vector<3x256xf32>, vector<3x256xf32>, vector<3x256xf32> -> vector<27x256xf32>
    %c1 = arith.constant 1 : index
    %c0_6 = arith.constant 0 : index
    %c0_7 = arith.constant 0 : index
    %14 = vector.load %arg1[%c1, %c0_6, %c0_7] : memref<2x3x384xf32, #tpu.memory_space<vmem>>, vector<1x3x384xf32>
    %15 = vector.shape_cast %14 : vector<1x3x384xf32> to vector<3x384xf32>
    %16 = vector.extract_strided_slice %15 {offsets = [0, 0], sizes = [3, 256], strides = [1, 1]} : vector<3x384xf32> to vector<3x256xf32>
    %17 = vector.extract_strided_slice %15 {offsets = [0, 1], sizes = [3, 256], strides = [1, 1]} : vector<3x384xf32> to vector<3x256xf32>
    %18 = vector.extract_strided_slice %15 {offsets = [0, 2], sizes = [3, 256], strides = [1, 1]} : vector<3x384xf32> to vector<3x256xf32>
    %19 = vector.extract_strided_slice %15 {offsets = [0, 16], sizes = [3, 256], strides = [1, 1]} : vector<3x384xf32> to vector<3x256xf32>
    %20 = vector.extract_strided_slice %15 {offsets = [0, 17], sizes = [3, 256], strides = [1, 1]} : vector<3x384xf32> to vector<3x256xf32>
    %21 = vector.extract_strided_slice %15 {offsets = [0, 18], sizes = [3, 256], strides = [1, 1]} : vector<3x384xf32> to vector<3x256xf32>
    %22 = vector.extract_strided_slice %15 {offsets = [0, 32], sizes = [3, 256], strides = [1, 1]} : vector<3x384xf32> to vector<3x256xf32>
    %23 = vector.extract_strided_slice %15 {offsets = [0, 33], sizes = [3, 256], strides = [1, 1]} : vector<3x384xf32> to vector<3x256xf32>
    %24 = vector.extract_strided_slice %15 {offsets = [0, 34], sizes = [3, 256], strides = [1, 1]} : vector<3x384xf32> to vector<3x256xf32>
    %25 = tpu.concatenate %16, %17, %18, %19, %20, %21, %22, %23, %24 in 0 : vector<3x256xf32>, vector<3x256xf32>, vector<3x256xf32>, vector<3x256xf32>, vector<3x256xf32>, vector<3x256xf32>, vector<3x256xf32>, vector<3x256xf32>, vector<3x256xf32> -> vector<27x256xf32>
    %26 = tpu.concatenate %13, %25 in 1 : vector<27x256xf32>, vector<27x256xf32> -> vector<27x512xf32>
    %cst = arith.constant dense<0.000000e+00> : vector<8x512xf32>
    %27 = tpu.matmul %0, %26, %cst {dimension_numbers = #tpu.dot_dimension_numbers<[1], [0], [0], [1], [0, 0, 1, 1], [], []>} : vector<8x27xf32>, vector<27x512xf32>, vector<8x512xf32> -> vector<8x512xf32>
    %28 = vector.broadcast %1 : vector<8x1xf32> to vector<8x512xf32>
    %29 = arith.addf %27, %28 : vector<8x512xf32>
    %30 = vector.extract_strided_slice %29 {offsets = [0, 0], sizes = [8, 256], strides = [1, 1]} : vector<8x512xf32> to vector<8x256xf32>
    %c0_8 = arith.constant 0 : index
    %c0_9 = arith.constant 0 : index
    %c0_10 = arith.constant 0 : index
    %31 = vector.load %arg4[%c0_8, %c0_9, %c0_10] : memref<2x8x256xf32, #tpu.memory_space<vmem>>, vector<1x8x256xf32>
    %32 = vector.shape_cast %31 : vector<1x8x256xf32> to vector<8x256xf32>
    %33 = vector.shape_cast %30 : vector<8x256xf32> to vector<1x8x256xf32>
    tpu.vector_store %arg4[%c0_8, %c0_9, %c0_10], %33 {strides = array<i32>} : memref<2x8x256xf32, #tpu.memory_space<vmem>>, vector<1x8x256xf32>,
    %34 = vector.extract_strided_slice %29 {offsets = [0, 256], sizes = [8, 256], strides = [1, 1]} : vector<8x512xf32> to vector<8x256xf32>
    %c1_11 = arith.constant 1 : index
    %c0_12 = arith.constant 0 : index
    %c0_13 = arith.constant 0 : index
    %35 = vector.load %arg4[%c1_11, %c0_12, %c0_13] : memref<2x8x256xf32, #tpu.memory_space<vmem>>, vector<1x8x256xf32>
    %36 = vector.shape_cast %35 : vector<1x8x256xf32> to vector<8x256xf32>
    %37 = vector.shape_cast %34 : vector<8x256xf32> to vector<1x8x256xf32>
    tpu.vector_store %arg4[%c1_11, %c0_12, %c0_13], %37 {strides = array<i32>} : memref<2x8x256xf32, #tpu.memory_space<vmem>>, vector<1x8x256xf32>,
    return
  }
  func.func @transform_0(%arg0: i32) -> (i32, i32, i32) {
    %c0_i32 = arith.constant 0 : i32
    %c0_i32_0 = arith.constant 0 : i32
    %c0_i32_1 = arith.constant 0 : i32
    return %arg0, %c0_i32, %c0_i32_0 : i32, i32, i32
  }
  func.func @transform_1(%arg0: i32) -> (i32, i32) {
    %c0_i32 = arith.constant 0 : i32
    %c0_i32_0 = arith.constant 0 : i32
    %c0_i32_1 = arith.constant 0 : i32
    return %c0_i32, %c0_i32_0 : i32, i32
  }
  func.func @transform_2(%arg0: i32) -> (i32, i32) {
    %c0_i32 = arith.constant 0 : i32
    %c0_i32_0 = arith.constant 0 : i32
    %c0_i32_1 = arith.constant 0 : i32
    return %c0_i32, %c0_i32_0 : i32, i32
  }
  func.func @transform_3(%arg0: i32) -> (i32, i32, i32) {
    %c0_i32 = arith.constant 0 : i32
    %c0_i32_0 = arith.constant 0 : i32
    %c0_i32_1 = arith.constant 0 : i32
    return %arg0, %c0_i32, %c0_i32_0 : i32, i32, i32
  }
}

</mosaic_0001>

<llo_original>
// kernel: conv2d_pallas.1
$region0: #{conv2d_pallas.1}
  #allocation0 [shape = 'u32[]', space=smem, size = 0x4, offset = 0x4, fixed_abs, tag = 'smem constant byte address 0x4 - core index']
  #allocation1 [shape = 'u32[144,128]{1,0:T(1,128)}', space=vmem, size = 0x12000, scoped, tag = 'internal scratch']
  %s0 = inlined_call_operand.vmem [shape: f32[2,3,384], index: 0, kind: input, shape index: {}]
  %s1 = inlined_call_operand.vmem [shape: f32[8,27], index: 1, kind: input, shape index: {}]
  %s2 = inlined_call_operand.vmem [shape: f32[8,1], index: 2, kind: input, shape index: {}]
  %s3 = inlined_call_operand.vmem [shape: f32[2,8,256], index: 3, kind: output, shape index: {}]
  %s4 = sld [smem:[#allocation0]]
  $region22: #{conv2d_pallas.1} parent=0
    _
  %s6 = ssub.s32 1, %s4
  %s7 = scalar_select 0, %s6, %s4
  // Predicated region
  $region2: #{conv2d_pallas.1} parent=0 // pred_check
    _
  $region3: #{conv2d_pallas.1} parent=0 // pred_check_branch
    %9 = sbr.rel (0) target = $region5
  $region4: #{conv2d_pallas.1} parent=0 // pred_region
    _
  $region5: #{conv2d_pallas.1} parent=0 // pred_fallthru
    _
  // Predicated region
  $region6: #{conv2d_pallas.1} parent=0 // pred_check
    _
  $region7: #{conv2d_pallas.1} parent=0 // pred_check_branch
    %11 = sbr.rel (0) target = $region9
  $region8: #{conv2d_pallas.1} parent=0 // pred_region
    _
  $region9: #{conv2d_pallas.1} parent=0 // pred_fallthru
    _
  // Predicated region
  $region10: #{conv2d_pallas.1} parent=0 // pred_check
    _
  $region11: #{conv2d_pallas.1} parent=0 // pred_check_branch
    %13 = sbr.rel (0) target = $region13
  $region12: #{conv2d_pallas.1} parent=0 // pred_region
    _
  $region13: #{conv2d_pallas.1} parent=0 // pred_fallthru
    _
  %v14 = vld [vmem:[%s1] sm:$0xff]
  %v15 = vld [vmem:[%s2] sm:$0xff]
  %v16 = vld [vmem:[%s0] sm:$0x77]
  %v17 = vld [vmem:[%s0 + $0x8] sm:$0x7]
  %v19 = vcombine.high %v16, %v16
  %v22 = vrot.slane %v16, 5
  %v23 = vrot.slane %v19, 5
  %v24 = vrot.slane %v17, 5
  %25 = vrot.lane.b32.xlu0 %v22, 127
  %v26 = vpop.permute.xlu0 %25
  %27 = vrot.lane.b32.xlu0 %v23, 127
  %v28 = vpop.permute.xlu0 %27
  %29 = vrot.lane.b32.xlu0 %v24, 127
  %v30 = vpop.permute.xlu0 %29
  %vm31 = vcmask 1039360
  %v32 = vsel %vm31, %v26, %v28
  %v33 = vsel %vm31, %v28, %v30
  %v36 = vrot.slane %v16, 2
  %v37 = vrot.slane %v19, 2
  %v38 = vrot.slane %v17, 2
  %39 = vrot.lane.b32.xlu0 %v36, 126
  %v40 = vpop.permute.xlu0 %39
  %41 = vrot.lane.b32.xlu0 %v37, 126
  %v42 = vpop.permute.xlu0 %41
  %43 = vrot.lane.b32.xlu0 %v38, 126
  %v44 = vpop.permute.xlu0 %43
  %vm45 = vcmask 1031168
  %v46 = vsel %vm45, %v40, %v42
  %v47 = vsel %vm45, %v42, %v44
  %v50 = vrot.slane %v16, 7
  %v51 = vrot.slane %v19, 7
  %v52 = vrot.slane %v17, 7
  %53 = vrot.lane.b32.xlu0 %v50, 112
  %v54 = vpop.permute.xlu0 %53
  %55 = vrot.lane.b32.xlu0 %v51, 112
  %v56 = vpop.permute.xlu0 %55
  %57 = vrot.lane.b32.xlu0 %v52, 112
  %v58 = vpop.permute.xlu0 %57
  %vm59 = vcmask 916480
  %v60 = vsel %vm59, %v54, %v56
  %v61 = vsel %vm59, %v56, %v58
  %v64 = vcombine.low %v16, %v16
  %v65 = vcombine.low %v17, %v17
  %66 = vrot.lane.b32.xlu0 %v64, 111
  %v67 = vpop.permute.xlu0 %66
  %68 = vrot.lane.b32.xlu0 %v16, 111
  %v69 = vpop.permute.xlu0 %68
  %70 = vrot.lane.b32.xlu0 %v65, 111
  %v71 = vpop.permute.xlu0 %70
  %vm72 = vcmask 908288
  %v73 = vsel %vm72, %v67, %v69
  %v74 = vsel %vm72, %v69, %v71
  %v77 = vrot.slane %v16, 1
  %v78 = vrot.slane %v19, 1
  %v79 = vrot.slane %v17, 1
  %80 = vrot.lane.b32.xlu0 %v77, 110
  %v81 = vpop.permute.xlu0 %80
  %82 = vrot.lane.b32.xlu0 %v78, 110
  %v83 = vpop.permute.xlu0 %82
  %84 = vrot.lane.b32.xlu0 %v79, 110
  %v85 = vpop.permute.xlu0 %84
  %vm86 = vcmask 900096
  %v87 = vsel %vm86, %v81, %v83
  %v88 = vsel %vm86, %v83, %v85
  %v91 = vrot.slane %v16, 6
  %v92 = vrot.slane %v19, 6
  %v93 = vrot.slane %v17, 6
  %94 = vrot.lane.b32.xlu0 %v91, 96
  %v95 = vpop.permute.xlu0 %94
  %96 = vrot.lane.b32.xlu0 %v92, 96
  %v97 = vpop.permute.xlu0 %96
  %98 = vrot.lane.b32.xlu0 %v93, 96
  %v99 = vpop.permute.xlu0 %98
  %vm100 = vcmask 785408
  %v101 = vsel %vm100, %v95, %v97
  %v102 = vsel %vm100, %v97, %v99
  %v105 = vrot.slane %v16, 3
  %v106 = vrot.slane %v19, 3
  %v107 = vrot.slane %v17, 3
  %108 = vrot.lane.b32.xlu0 %v105, 95
  %v109 = vpop.permute.xlu0 %108
  %110 = vrot.lane.b32.xlu0 %v106, 95
  %v111 = vpop.permute.xlu0 %110
  %112 = vrot.lane.b32.xlu0 %v107, 95
  %v113 = vpop.permute.xlu0 %112
  %vm114 = vcmask 777216
  %v115 = vsel %vm114, %v109, %v111
  %v116 = vsel %vm114, %v111, %v113
  %119 = vrot.lane.b32.xlu0 %v16, 94
  %v120 = vpop.permute.xlu0 %119
  %121 = vrot.lane.b32.xlu0 %v19, 94
  %v122 = vpop.permute.xlu0 %121
  %123 = vrot.lane.b32.xlu0 %v17, 94
  %v124 = vpop.permute.xlu0 %123
  %vm125 = vcmask 769024
  %v126 = vsel %vm125, %v120, %v122
  %v127 = vsel %vm125, %v122, %v124
  %vm128 = vcmask 1042432
  %v129 = vsel %vm128, %v16, %v32
  %v130 = vsel %vm128, %v19, %v33
  %vm131 = vcmask 1045504
  %v132 = vsel %vm131, %v129, %v46
  %v133 = vsel %vm131, %v130, %v47
  %vm134 = vcmask 1040384
  %v135 = vsel %vm134, %v46, %v60
  %v136 = vsel %vm134, %v47, %v61
  %vm137 = vcmask 1043456
  %v138 = vsel %vm137, %v135, %v73
  %v139 = vsel %vm137, %v136, %v74
  %vm140 = vcmask 1046528
  %v141 = vsel %vm140, %v138, %v87
  %v142 = vsel %vm140, %v139, %v88
  %vm143 = vcmask 1041408
  %v144 = vsel %vm143, %v87, %v101
  %v145 = vsel %vm143, %v88, %v102
  %vm146 = vcmask 1044480
  %v147 = vsel %vm146, %v144, %v115
  %v148 = vsel %vm146, %v145, %v116
  %s149 = scalar_lea.vmem %s0, 12
  %v150 = vld [vmem:[%s149] sm:$0x77]
  %v151 = vld [vmem:[%s149 + $0x8] sm:$0x7]
  %v153 = vcombine.high %v150, %v150
  %v156 = vrot.slane %v150, 5
  %v157 = vrot.slane %v153, 5
  %v158 = vrot.slane %v151, 5
  %159 = vrot.lane.b32.xlu0 %v156, 127
  %v160 = vpop.permute.xlu0 %159
  %161 = vrot.lane.b32.xlu0 %v157, 127
  %v162 = vpop.permute.xlu0 %161
  %163 = vrot.lane.b32.xlu0 %v158, 127
  %v164 = vpop.permute.xlu0 %163
  %v165 = vsel %vm31, %v160, %v162
  %v166 = vsel %vm31, %v162, %v164
  %v169 = vrot.slane %v150, 2
  %v170 = vrot.slane %v153, 2
  %v171 = vrot.slane %v151, 2
  %172 = vrot.lane.b32.xlu0 %v169, 126
  %v173 = vpop.permute.xlu0 %172
  %174 = vrot.lane.b32.xlu0 %v170, 126
  %v175 = vpop.permute.xlu0 %174
  %176 = vrot.lane.b32.xlu0 %v171, 126
  %v177 = vpop.permute.xlu0 %176
  %v178 = vsel %vm45, %v173, %v175
  %v179 = vsel %vm45, %v175, %v177
  %v182 = vrot.slane %v150, 7
  %v183 = vrot.slane %v153, 7
  %v184 = vrot.slane %v151, 7
  %185 = vrot.lane.b32.xlu0 %v182, 112
  %v186 = vpop.permute.xlu0 %185
  %187 = vrot.lane.b32.xlu0 %v183, 112
  %v188 = vpop.permute.xlu0 %187
  %189 = vrot.lane.b32.xlu0 %v184, 112
  %v190 = vpop.permute.xlu0 %189
  %v191 = vsel %vm59, %v186, %v188
  %v192 = vsel %vm59, %v188, %v190
  %v195 = vcombine.low %v150, %v150
  %v196 = vcombine.low %v151, %v151
  %197 = vrot.lane.b32.xlu0 %v195, 111
  %v198 = vpop.permute.xlu0 %197
  %199 = vrot.lane.b32.xlu0 %v150, 111
  %v200 = vpop.permute.xlu0 %199
  %201 = vrot.lane.b32.xlu0 %v196, 111
  %v202 = vpop.permute.xlu0 %201
  %v203 = vsel %vm72, %v198, %v200
  %v204 = vsel %vm72, %v200, %v202
  %v207 = vrot.slane %v150, 1
  %v208 = vrot.slane %v153, 1
  %v209 = vrot.slane %v151, 1
  %210 = vrot.lane.b32.xlu0 %v207, 110
  %v211 = vpop.permute.xlu0 %210
  %212 = vrot.lane.b32.xlu0 %v208, 110
  %v213 = vpop.permute.xlu0 %212
  %214 = vrot.lane.b32.xlu0 %v209, 110
  %v215 = vpop.permute.xlu0 %214
  %v216 = vsel %vm86, %v211, %v213
  %v217 = vsel %vm86, %v213, %v215
  %v220 = vrot.slane %v150, 6
  %v221 = vrot.slane %v153, 6
  %v222 = vrot.slane %v151, 6
  %223 = vrot.lane.b32.xlu0 %v220, 96
  %v224 = vpop.permute.xlu0 %223
  %225 = vrot.lane.b32.xlu0 %v221, 96
  %v226 = vpop.permute.xlu0 %225
  %227 = vrot.lane.b32.xlu0 %v222, 96
  %v228 = vpop.permute.xlu0 %227
  %v229 = vsel %vm100, %v224, %v226
  %v230 = vsel %vm100, %v226, %v228
  %v233 = vrot.slane %v150, 3
  %v234 = vrot.slane %v153, 3
  %v235 = vrot.slane %v151, 3
  %236 = vrot.lane.b32.xlu0 %v233, 95
  %v237 = vpop.permute.xlu0 %236
  %238 = vrot.lane.b32.xlu0 %v234, 95
  %v239 = vpop.permute.xlu0 %238
  %240 = vrot.lane.b32.xlu0 %v235, 95
  %v241 = vpop.permute.xlu0 %240
  %v242 = vsel %vm114, %v237, %v239
  %v243 = vsel %vm114, %v239, %v241
  %246 = vrot.lane.b32.xlu0 %v150, 94
  %v247 = vpop.permute.xlu0 %246
  %248 = vrot.lane.b32.xlu0 %v153, 94
  %v249 = vpop.permute.xlu0 %248
  %250 = vrot.lane.b32.xlu0 %v151, 94
  %v251 = vpop.permute.xlu0 %250
  %v252 = vsel %vm125, %v247, %v249
  %v253 = vsel %vm125, %v249, %v251
  %v254 = vsel %vm128, %v150, %v165
  %v255 = vsel %vm128, %v153, %v166
  %v256 = vsel %vm131, %v254, %v178
  %v257 = vsel %vm131, %v255, %v179
  %v258 = vsel %vm134, %v178, %v191
  %v259 = vsel %vm134, %v179, %v192
  %v260 = vsel %vm137, %v258, %v203
  %v261 = vsel %vm137, %v259, %v204
  %v262 = vsel %vm140, %v260, %v216
  %v263 = vsel %vm140, %v261, %v217
  %v264 = vsel %vm143, %v216, %v229
  %v265 = vsel %vm143, %v217, %v230
  %v266 = vsel %vm146, %v264, %v242
  %v267 = vsel %vm146, %v265, %v243
  %269 = vset.pattern.permute.xlu0 0
  %270 = vperm.xlu0 %269, %v15
  %v271 = vpop.permute.xlu0 %270
  %vm273 = vcmask 220160
  %v275 = vsel %vm273, %v14, 0
  %v277 = vsel %vm128, %v126, 0
  %v279 = vsel %vm128, %v127, 0
  %v281 = vsel %vm128, %v252, 0
  %v283 = vsel %vm128, %v253, 0
  %285 = vmatprep.subr.mxu0 %v133
  %286 = vmatpush1.msra.mxu0 %v132
  %287 = vmatprep.subr.mxu0 %v142
  %288 = vmatpush1.msra.mxu0 %v141
  %289 = vmatprep.subr.mxu0 %v148
  %290 = vmatpush1.msra.mxu0 %v147
  %291 = vmatprep.subr.mxu0 %v279
  %292 = vmatpush1.msra.mxu0 %v277
  %293 = vmatprep.subr.mxu0 0.0
  %294 = vmatpush1.msra.mxu0 0.0
  %295 = vmatprep.subr.mxu0 0.0
  %296 = vmatpush1.msra.mxu0 0.0
  %297 = vmatprep.subr.mxu0 0.0
  %298 = vmatpush1.msra.mxu0 0.0
  %299 = vmatprep.subr.mxu0 0.0
  %300 = vmatpush1.msra.mxu0 0.0
  %301 = vmatprep.subr.mxu0 0.0
  %302 = vmatpush1.msra.mxu0 0.0
  %303 = vmatprep.subr.mxu0 0.0
  %304 = vmatpush1.msra.mxu0 0.0
  %305 = vmatprep.subr.mxu0 0.0
  %306 = vmatpush1.msra.mxu0 0.0
  %307 = vmatprep.subr.mxu0 0.0
  %308 = vmatpush1.msra.mxu0 0.0
  %309 = vmatprep.subr.mxu0 0.0
  %310 = vmatpush1.msra.mxu0 0.0
  %311 = vmatprep.subr.mxu0 0.0
  %312 = vmatpush1.msra.mxu0 0.0
  %313 = vmatprep.subr.mxu0 0.0
  %314 = vmatpush1.msra.mxu0 0.0
  %315 = vmatprep.subr.mxu0 0.0
  %316 = vmatpush1.msra.mxu0 0.0
  %317 = vmatprep.subr.mxu0 0.0
  %318 = vmatpush1.msra.mxu0 0.0
  %319 = vmatprep.subr.mxu0 0.0
  %320 = vmatpush1.msra.mxu0 0.0
  %321 = vmatprep.subr.mxu0 0.0
  %322 = vmatpush1.msra.mxu0 0.0
  %323 = vmatprep.subr.mxu0 0.0
  %324 = vmatpush1.msra.mxu0 0.0
  %325 = vmatprep.subr.mxu0 0.0
  %326 = vmatpush1.msra.mxu0 0.0
  %327 = vmatprep.subr.mxu0 0.0
  %328 = vmatpush1.msra.mxu0 0.0
  %329 = vmatprep.subr.mxu0 0.0
  %330 = vmatpush1.msra.mxu0 0.0
  %331 = vmatprep.subr.mxu0 0.0
  %332 = vmatpush1.msra.mxu0 0.0
  %333 = vmatprep.subr.mxu0 0.0
  %334 = vmatpush1.msra.mxu0 0.0
  %335 = vmatprep.subr.mxu0 0.0
  %336 = vmatpush1.msra.mxu0 0.0
  %337 = vmatprep.subr.mxu0 0.0
  %338 = vmatpush1.msra.mxu0 0.0
  %339 = vmatprep.subr.mxu0 0.0
  %340 = vmatpush1.msra.mxu0 0.0
  %341 = vmatprep.subr.mxu0 0.0
  %342 = vmatpush1.msra.mxu0 0.0
  %343 = vmatprep.subr.mxu0 0.0
  %344 = vmatpush1.msra.mxu0 0.0
  %345 = vmatprep.subr.mxu0 0.0
  %346 = vmatpush1.msra.mxu0 0.0
  %347 = vmatprep.subr.mxu0 0.0
  %348 = vmatpush1.msra.mxu0 0.0
  %349 = vmatprep.mubr.f32.mxu0 0.0
  %350 = vmatmul.mubr.f32.gmra.mrb[0].mxu0 %v275
  %v351 = vpop.f32.mrb[0].mxu0
  %v352 = vadd.f32 %v271, %v351
  %v353 = vpop.f32.mrb[0].mxu0
  %v354 = vadd.f32 %v271, %v353
  %355 = vdwg.mxu0
  %356 = vmatprep.subr.mxu0 %v257
  %357 = vmatpush1.msra.mxu0 %v256
  %358 = vmatprep.subr.mxu0 %v263
  %359 = vmatpush1.msra.mxu0 %v262
  %360 = vmatprep.subr.mxu0 %v267
  %361 = vmatpush1.msra.mxu0 %v266
  %362 = vmatprep.subr.mxu0 %v283
  %363 = vmatpush1.msra.mxu0 %v281
  %364 = vmatprep.subr.mxu0 0.0
  %365 = vmatpush1.msra.mxu0 0.0
  %366 = vmatprep.subr.mxu0 0.0
  %367 = vmatpush1.msra.mxu0 0.0
  %368 = vmatprep.subr.mxu0 0.0
  %369 = vmatpush1.msra.mxu0 0.0
  %370 = vmatprep.subr.mxu0 0.0
  %371 = vmatpush1.msra.mxu0 0.0
  %372 = vmatprep.subr.mxu0 0.0
  %373 = vmatpush1.msra.mxu0 0.0
  %374 = vmatprep.subr.mxu0 0.0
  %375 = vmatpush1.msra.mxu0 0.0
  %376 = vmatprep.subr.mxu0 0.0
  %377 = vmatpush1.msra.mxu0 0.0
  %378 = vmatprep.subr.mxu0 0.0
  %379 = vmatpush1.msra.mxu0 0.0
  %380 = vmatprep.subr.mxu0 0.0
  %381 = vmatpush1.msra.mxu0 0.0
  %382 = vmatprep.subr.mxu0 0.0
  %383 = vmatpush1.msra.mxu0 0.0
  %384 = vmatprep.subr.mxu0 0.0
  %385 = vmatpush1.msra.mxu0 0.0
  %386 = vmatprep.subr.mxu0 0.0
  %387 = vmatpush1.msra.mxu0 0.0
  %388 = vmatprep.subr.mxu0 0.0
  %389 = vmatpush1.msra.mxu0 0.0
  %390 = vmatprep.subr.mxu0 0.0
  %391 = vmatpush1.msra.mxu0 0.0
  %392 = vmatprep.subr.mxu0 0.0
  %393 = vmatpush1.msra.mxu0 0.0
  %394 = vmatprep.subr.mxu0 0.0
  %395 = vmatpush1.msra.mxu0 0.0
  %396 = vmatprep.subr.mxu0 0.0
  %397 = vmatpush1.msra.mxu0 0.0
  %398 = vmatprep.subr.mxu0 0.0
  %399 = vmatpush1.msra.mxu0 0.0
  %400 = vmatprep.subr.mxu0 0.0
  %401 = vmatpush1.msra.mxu0 0.0
  %402 = vmatprep.subr.mxu0 0.0
  %403 = vmatpush1.msra.mxu0 0.0
  %404 = vmatprep.subr.mxu0 0.0
  %405 = vmatpush1.msra.mxu0 0.0
  %406 = vmatprep.subr.mxu0 0.0
  %407 = vmatpush1.msra.mxu0 0.0
  %408 = vmatprep.subr.mxu0 0.0
  %409 = vmatpush1.msra.mxu0 0.0
  %410 = vmatprep.subr.mxu0 0.0
  %411 = vmatpush1.msra.mxu0 0.0
  %412 = vmatprep.subr.mxu0 0.0
  %413 = vmatpush1.msra.mxu0 0.0
  %414 = vmatprep.subr.mxu0 0.0
  %415 = vmatpush1.msra.mxu0 0.0
  %416 = vmatprep.subr.mxu0 0.0
  %417 = vmatpush1.msra.mxu0 0.0
  %418 = vmatprep.subr.mxu0 0.0
  %419 = vmatpush1.msra.mxu0 0.0
  %420 = vmatprep.mubr.f32.mxu0 0.0
  %421 = vmatmul.mubr.f32.gmra.mrb[0].mxu0 %v275
  %v422 = vpop.f32.mrb[0].mxu0
  %v423 = vadd.f32 %v271, %v422
  %v424 = vpop.f32.mrb[0].mxu0
  %v425 = vadd.f32 %v271, %v424
  %426 = vdwg.mxu0
  %427 = vst [vmem:[%s3] sm:$0xff] %v352
  %428 = vst [vmem:[%s3 + $0x8] sm:$0xff] %v354
  %s429 = scalar_lea.vmem %s3, 16
  %430 = vst [vmem:[%s429] sm:$0xff] %v423
  %431 = vst [vmem:[%s429 + $0x8] sm:$0xff] %v425
  // Predicated region
  $region14: #{conv2d_pallas.1} parent=0 // pred_check
    _
  $region15: #{conv2d_pallas.1} parent=0 // pred_check_branch
    %433 = sbr.rel (0) target = $region17
  $region16: #{conv2d_pallas.1} parent=0 // pred_region
    _
  $region17: #{conv2d_pallas.1} parent=0 // pred_fallthru
    _
  // Predicated region
  $region18: #{conv2d_pallas.1} parent=0 // pred_check
    _
  $region19: #{conv2d_pallas.1} parent=0 // pred_check_branch
    %435 = sbr.rel (0) target = $region21
  $region20: #{conv2d_pallas.1} parent=0 // pred_region
    _
  $region21: #{conv2d_pallas.1} parent=0 // pred_fallthru
    _

</llo_original>
